<compile_context>
chip_gen: v7x
topology: tpu7x:2x2x1
jax: 0.10.0
libtpu: 0.0.40
codegen_flags: <defaults>
</compile_context>

<pallas_src>
import numpy as np
import jax
import jax.numpy as jnp
from jax.experimental import pallas as pl
from jax.experimental.pallas import tpu as pltpu


# ----------------------------------------------------------------------------------
# deterministic "parameter" setup (no learned weights in the torch module)
# ----------------------------------------------------------------------------------
def gaussian_kernel_1d(sigma: float, num_sigmas: float = 3.0) -> np.ndarray:
    """float64 Gaussian kernel identical to the torch reference (Normal pdf, normalized)."""
    radius = int(num_sigmas * sigma) + 1
    support = np.arange(-radius, radius + 1, dtype=np.float64)
    kern = np.exp(-0.5 * (support / sigma) ** 2) / (sigma * np.sqrt(2.0 * np.pi))
    return kern / kern.sum()


def _stencil_params(grad_step):
    """Static constants baked into the kernel closure: 1/h and the Gaussian taps."""
    h = float(np.float64(grad_step))
    inv_h = float(np.float64(1.0) / np.float64(h)) if h != 0.0 else float("inf")
    sigma = (grad_step * 2 - 1) / 6
    weights = tuple(float(w) for w in gaussian_kernel_1d(sigma=sigma))
    return inv_h, weights


# ----------------------------------------------------------------------------------
# in-kernel tile math (shared by all kernels)
# ----------------------------------------------------------------------------------
def _smoothed_grad_tile(env, *, n, inv_h, weights):
    """torch.gradient (central diff, spacing=1/inv_h, 1st-order one-sided edges) followed by
    the zero-padded symmetric Gaussian conv1d — as a banded stencil of pltpu.roll
    shifted multiply-adds (XLU rolls + VPU FMAs, no MXU / no dense operator)."""
    radius = (len(weights) - 1) // 2
    col = jax.lax.broadcasted_iota(jnp.int32, env.shape, 1)
    nxt = pltpu.roll(env, shift=n - 1, axis=1)            # env[t+1]  (wrap fixed by masks)
    prv = pltpu.roll(env, shift=1, axis=1)                # env[t-1]
    grad = jnp.where(
        col == 0, (nxt - env) * inv_h,
        jnp.where(col == n - 1, (env - prv) * inv_h, (nxt - prv) * (0.5 * inv_h)))
    sg = jnp.zeros_like(grad)
    for k in range(-radius, radius + 1):
        shifted = grad if k == 0 else pltpu.roll(grad, shift=(-k) % n, axis=1)  # grad[t+k]
        valid = jnp.logical_and(col + k >= 0, col + k < n)                      # conv zero-pad
        sg = sg + jnp.where(valid, shifted, 0.0) * weights[k + radius]
    return sg


def _edges_tile(sg, thres_pos, *, n):
    """(sg > thr), (sg < -thr/4) and torch.diff of the masks; full lane width N with the
    last column zeroed (so downstream argwhere never sees the wrapped diff)."""
    col = jax.lax.broadcasted_iota(jnp.int32, sg.shape, 1)
    thres_neg = -thres_pos * 0.25
    gp = (sg > thres_pos).astype(jnp.float32)
    gm = (sg < thres_neg).astype(jnp.float32)
    dpp = pltpu.roll(gp, shift=n - 1, axis=1) - gp        # gp[t+1] - gp[t]
    dpm = pltpu.roll(gm, shift=n - 1, axis=1) - gm
    last = col == n - 1
    pp = jnp.where(last, 0.0, dpp).astype(jnp.int8)
    pm = jnp.where(last, 0.0, dpm).astype(jnp.int8)
    return pp, pm


# ----------------------------------------------------------------------------------
# Pallas kernels
# ----------------------------------------------------------------------------------
def _make_fused_kernel(n, inv_h, weights):
    """Hot path: env -> (peak_plus, peak_minu) in ONE kernel (threshold known up front)."""
    def kernel(thres_ref, env_ref, pp_ref, pm_ref):
        sg = _smoothed_grad_tile(env_ref[...], n=n, inv_h=inv_h, weights=weights)
        pp, pm = _edges_tile(sg, thres_ref[0], n=n)
        pp_ref[...] = pp
        pm_ref[...] = pm
    return kernel


def _make_sg_kernel(n, inv_h, weights):
    """threshold=None path: env -> smoothed gradient (needed to compute std(sg))."""
    def kernel(env_ref, sg_ref):
        sg_ref[...] = _smoothed_grad_tile(env_ref[...], n=n, inv_h=inv_h, weights=weights)
    return kernel


def _make_edge_kernel(n):
    """threshold=None path: sg -> (peak_plus, peak_minu)."""
    def kernel(thres_ref, sg_ref, pp_ref, pm_ref):
        pp, pm = _edges_tile(sg_ref[...], thres_ref[0], n=n)
        pp_ref[...] = pp
        pm_ref[...] = pm
    return kernel


# ----------------------------------------------------------------------------------
# wrappers (pallas_call built once per shape/grad_step and cached)
# ----------------------------------------------------------------------------------
_CALL_CACHE = {}


def _full_spec(b, n):
    return pl.BlockSpec((b, n), lambda i: (0, 0))


def fused_grad_peak_edges(env, thres_pos, grad_step):
    b, n = env.shape
    key = ("fused", b, n, int(grad_step))
    if key not in _CALL_CACHE:
        inv_h, weights = _stencil_params(grad_step)
        _CALL_CACHE[key] = pl.pallas_call(
            _make_fused_kernel(n, inv_h, weights),
            out_shape=(jax.ShapeDtypeStruct((b, n), jnp.int8),
                       jax.ShapeDtypeStruct((b, n), jnp.int8)),
            grid=(1,),
            in_specs=[pl.BlockSpec(memory_space=pltpu.MemorySpace.SMEM),   # scalar threshold
                      _full_spec(b, n)],
            out_specs=(_full_spec(b, n), _full_spec(b, n)),
        )
    thres = jnp.asarray(thres_pos, dtype=jnp.float32).reshape((1,))
    return _CALL_CACHE[key](thres, env.astype(jnp.float32))


def smoothed_gradient(env, grad_step):
    b, n = env.shape
    key = ("sg", b, n, int(grad_step))
    if key not in _CALL_CACHE:
        inv_h, weights = _stencil_params(grad_step)
        _CALL_CACHE[key] = pl.pallas_call(
            _make_sg_kernel(n, inv_h, weights),
            out_shape=jax.ShapeDtypeStruct((b, n), jnp.float32),
            grid=(1,),
            in_specs=[_full_spec(b, n)],
            out_specs=_full_spec(b, n),
        )
    return _CALL_CACHE[key](env.astype(jnp.float32))


def peak_edges(sg, thres_pos):
    b, n = sg.shape
    key = ("edge", b, n)
    if key not in _CALL_CACHE:
        _CALL_CACHE[key] = pl.pallas_call(
            _make_edge_kernel(n),
            out_shape=(jax.ShapeDtypeStruct((b, n), jnp.int8),
                       jax.ShapeDtypeStruct((b, n), jnp.int8)),
            grid=(1,),
            in_specs=[pl.BlockSpec(memory_space=pltpu.MemorySpace.SMEM),
                      _full_spec(b, n)],
            out_specs=(_full_spec(b, n), _full_spec(b, n)),
        )
    thres = jnp.asarray(thres_pos, dtype=jnp.float32).reshape((1,))
    return _CALL_CACHE[key](thres, sg.astype(jnp.float32))


# ----------------------------------------------------------------------------------
# glue: Hilbert transform, peak pairing, module wrapper
# ----------------------------------------------------------------------------------
def hilbert_analytic(x: jax.Array) -> jax.Array:
    # TODO(synk): FFT has no Pallas TPU equivalent; Hilbert transform stays in plain jnp.fft.
    n = x.shape[-1]
    xf = jnp.fft.fft(x, axis=-1)
    h = np.zeros((n,), dtype=np.float32)
    if n % 2 == 0:
        h[0] = 1.0
        h[n // 2] = 1.0
        h[1:n // 2] = 2.0
    else:
        h[0] = 1.0
        h[1:(n + 1) // 2] = 2.0
    return jnp.fft.ifft(xf * jnp.asarray(h), axis=-1)


def grad_peak_detect(data, grad_step=None, threshold=None, ival_smin=None, ival_smax=None):
    grad_step = grad_step if grad_step is not None else 2
    ival_list = ([ival_smin, ival_smax]
                 if ival_smin is not None and ival_smax is not None
                 else [grad_step // 2, grad_step * 3])

    if threshold is not None:
        # hot path: gradient + Gaussian smoothing + threshold + diff fused in ONE Pallas call
        peak_plus, peak_minu = fused_grad_peak_edges(data, threshold, grad_step)
    else:
        # std(sg) is needed before thresholding, so sg must materialize (two Pallas calls).
        # (Like torch, the std**16 * 1.2e13 fallback is computed in f32 and can under/overflow.)
        sg = smoothed_gradient(data, grad_step)
        thres_pos = jnp.std(sg, ddof=1) ** 16 * 12000000000000.0       # torch std is unbiased
        peak_plus, peak_minu = peak_edges(sg, thres_pos)

    # TODO(synk): torch.argwhere / torch.unique produce data-dependent shapes; this pairing
    # bookkeeping has no static-shape Pallas equivalent, so it runs host-side on numpy.
    pp = np.asarray(peak_plus)
    pm = np.asarray(peak_minu)
    env = np.asarray(data)
    batch_size = pp.shape[0]
    args_plus = np.argwhere(pp == 1)
    args_minu = np.argwhere(pm == 1)
    peak_list = []
    max_len = 0
    for i in range(batch_size):
        ap = args_plus[args_plus[:, 0] == i, 1][:, None].astype(np.int64)
        am = args_minu[args_minu[:, 0] == i, 1][None, :].astype(np.int64)
        if ap.size == 0 or am.size == 0:
            peak_list.append(np.zeros((0, 2), dtype=np.int64))
            continue
        dmat = am - np.repeat(ap, am.shape[1], axis=1)
        dmat[dmat < 0] = 2 ** 32
        echo_peak_idcs = np.argmin(np.abs(dmat), axis=0)
        candidates = np.hstack([ap[echo_peak_idcs], am.T])
        gaps = np.diff(candidates, axis=1).squeeze()
        candidates = candidates[(gaps > ival_list[0]) & (gaps < ival_list[1]), :]
        if candidates.size == 0:
            return jnp.zeros((3, 0), dtype=data.dtype)                  # torch early-return
        apu, uniq_idcs = np.unique(candidates[:, 0], return_inverse=True)
        keep = np.diff(uniq_idcs.flatten(), prepend=-1) > 0
        amu = candidates[keep, 1]
        peaks = np.stack([apu.flatten(), amu.flatten()]).T
        peak_list.append(peaks)
        max_len = max(max_len, len(peaks))

    rows = []
    for i, echoes in enumerate(peak_list):
        if len(echoes) > 0:
            vals = env[i, echoes[:, 1][:, None]]
            row = np.hstack([echoes.astype(np.float64), vals.astype(np.float64)]).tolist()
            row = row + [[0.0, 0.0, 0.0]] * (max_len - len(echoes))
        else:
            row = [[0.0, 0.0, 0.0]] * max_len
        rows.append(row)
    batch_peaks = np.array(rows, dtype=np.asarray(data).dtype)
    return jnp.asarray(batch_peaks)


def toa_detect(frame, threshold=None, rescale_factor=1, echo_max=float("inf")):
    hilbert_data = jnp.abs(hilbert_analytic(frame)).astype(frame.dtype)
    # NOTE: like the torch reference, rescale_factor < 6 gives grad_step = 0 (h = 0).
    echoes = grad_peak_detect(
        hilbert_data,
        grad_step=rescale_factor // 6 * 5,
        ival_smin=rescale_factor,
        ival_smax=50 * rescale_factor,
        threshold=threshold,
    )
    echo_num = echoes.shape[1]
    if echo_num > echo_max:
        e = np.asarray(echoes)
        order = np.argsort(-e[..., -1], axis=1)
        e = np.take_along_axis(e, order[..., None], axis=1)[:, : int(echo_max)]
        order2 = np.argsort(e[..., 1], axis=1)
        e = np.take_along_axis(e, order2[..., None], axis=1)
        echoes = jnp.asarray(e)
    return echoes


class GradPeak:
    def __init__(self, threshold=None, rescale_factor=1, echo_max=float("inf"), onset_opt=False):
        self.threshold = threshold
        self.onset_opt = onset_opt
        self._fun = lambda x: toa_detect(
            x, threshold=threshold, rescale_factor=rescale_factor, echo_max=echo_max)

    def __call__(self, x):
        echoes = self._fun(jnp.squeeze(x, axis=1))
        return echoes[..., 1] if not self.onset_opt else echoes[..., 0]


# ----------------------------------------------------------------------------------
if __name__ == "__main__":
    B, N = 2, 512
    rescale_factor = 6          # -> grad_step = 5, sigma = 1.5, Gaussian kernel length 11
    threshold = 4e-3

    # deterministic synthetic "ultrasound frames": 3 Gaussian-windowed tone bursts each.
    t = np.arange(N, dtype=np.float64)
    centers = [[100.0, 230.0, 400.0], [150.0, 300.0, 430.0]]
    width = 8.0
    sig = np.zeros((B, N), dtype=np.float64)
    for bi in range(B):
        for c in centers[bi]:
            sig[bi] += np.exp(-0.5 * ((t - c) / width) ** 2) * np.sin(2 * np.pi * 0.1 * (t - c))
    key = jax.random.PRNGKey(0)
    noise = 0.0005 * jax.random.normal(key, (B, N), dtype=jnp.float32)
    x = (jnp.asarray(sig, dtype=jnp.float32) + noise)[:, None, :]        # (B, 1, N) NCW

    model = GradPeak(threshold=threshold, rescale_factor=rescale_factor)
    out = jax.block_until_ready(model(x))

    # --- sanity checks of the Pallas kernels against numpy references ---
    frame = jnp.squeeze(x, axis=1)
    env = np.asarray(jnp.abs(hilbert_analytic(frame)), dtype=np.float64)
    grad_step = 5
    w = gaussian_kernel_1d(sigma=(grad_step * 2 - 1) / 6)
    grad_ref = np.gradient(env, float(grad_step), axis=-1)               # 1st-order edges, like torch
    sg_ref = np.stack([np.convolve(grad_ref[i], w, mode="same") for i in range(B)])

    env32 = jnp.asarray(env, jnp.float32)
    sg_ker = np.asarray(smoothed_gradient(env32, grad_step))
    assert np.allclose(sg_ker, sg_ref, atol=1e-3), "smoothed-gradient stencil mismatch"

    pp_k, pm_k = peak_edges(jnp.asarray(sg_ker, jnp.float32), threshold)
    pp_k, pm_k = np.asarray(pp_k), np.asarray(pm_k)
    thr32 = np.float32(threshold)
    gp = (sg_ker > thr32).astype(np.int32)
    gm = (sg_ker < -thr32 * np.float32(0.25)).astype(np.int32)
    assert np.array_equal(pp_k[:, :-1], np.diff(gp, axis=-1)) and np.all(pp_k[:, -1] == 0), \
        "peak_plus mismatch"
    assert np.array_equal(pm_k[:, :-1], np.diff(gm, axis=-1)) and np.all(pm_k[:, -1] == 0), \
        "peak_minu mismatch"

    pp_f, pm_f = fused_grad_peak_edges(env32, threshold, grad_step)
    assert np.array_equal(np.asarray(pp_f), pp_k), "fused kernel peak_plus mismatch"
    assert np.array_equal(np.asarray(pm_f), pm_k), "fused kernel peak_minu mismatch"

    assert out.shape[0] == B and out.shape[1] >= 1 and out.dtype == jnp.float32
    print("KERNEL_OK")
</pallas_src>

<mosaic_0001>
module attributes {stable_mosaic.version = 11 : i64} {
  func.func @kernel(%arg0: i32, %arg1: memref<1xf32, #tpu.memory_space<smem>>, %arg2: memref<2x512xf32, #tpu.memory_space<vmem>>, %arg3: memref<2x512xi8, #tpu.memory_space<vmem>>, %arg4: memref<2x512xi8, #tpu.memory_space<vmem>>) attributes {dimension_semantics = [#tpu.dimension_semantics<arbitrary>], iteration_bounds = array<i64: 1>, scalar_prefetch = 0 : i64, scratch_operands = 0 : i64, tpu.core_type = #tpu.core_type<tc>, window_params = [{transform_indices = @transform_0, window_bounds = array<i64: 1>}, {pipeline_mode = #tpu.pipeline_mode<synchronous>, transform_indices = @transform_1, window_bounds = array<i64: 2, 512>}, {pipeline_mode = #tpu.pipeline_mode<synchronous>, transform_indices = @transform_2, window_bounds = array<i64: 2, 512>}, {pipeline_mode = #tpu.pipeline_mode<synchronous>, transform_indices = @transform_3, window_bounds = array<i64: 2, 512>}]} {
    %c0 = arith.constant 0 : index
    %c0_0 = arith.constant 0 : index
    %0 = vector.load %arg2[%c0, %c0_0] : memref<2x512xf32, #tpu.memory_space<vmem>>, vector<2x512xf32>
    %1 = tpu.iota {dimensions = array<i32: 1>} : vector<2x512xi32>
    %c511_i32 = arith.constant 511 : i32
    %2 = tpu.dynamic_rotate %0 by %c511_i32 dim 1 : vector<2x512xf32>, i32 -> vector<2x512xf32>
    %c1_i32 = arith.constant 1 : i32
    %3 = tpu.dynamic_rotate %0 by %c1_i32 dim 1 : vector<2x512xf32>, i32 -> vector<2x512xf32>
    %c0_i32 = arith.constant 0 : i32
    %4 = vector.broadcast %c0_i32 : i32 to vector<2x512xi32>
    %5 = arith.cmpi eq, %1, %4 : vector<2x512xi32>
    %6 = arith.subf %2, %0 : vector<2x512xf32>
    %cst = arith.constant 2.000000e-01 : f32
    %7 = vector.broadcast %cst : f32 to vector<2x512xf32>
    %8 = arith.mulf %6, %7 : vector<2x512xf32>
    %c511_i32_1 = arith.constant 511 : i32
    %9 = vector.broadcast %c511_i32_1 : i32 to vector<2x512xi32>
    %10 = arith.cmpi eq, %1, %9 : vector<2x512xi32>
    %11 = arith.subf %0, %3 : vector<2x512xf32>
    %cst_2 = arith.constant 2.000000e-01 : f32
    %12 = vector.broadcast %cst_2 : f32 to vector<2x512xf32>
    %13 = arith.mulf %11, %12 : vector<2x512xf32>
    %14 = arith.subf %2, %3 : vector<2x512xf32>
    %cst_3 = arith.constant 1.000000e-01 : f32
    %15 = vector.broadcast %cst_3 : f32 to vector<2x512xf32>
    %16 = arith.mulf %14, %15 : vector<2x512xf32>
    %17 = arith.select %10, %13, %16 : vector<2x512xi1>, vector<2x512xf32>
    %18 = arith.select %5, %8, %17 : vector<2x512xi1>, vector<2x512xf32>
    %cst_4 = arith.constant 0.000000e+00 : f32
    %19 = vector.broadcast %cst_4 : f32 to vector<2x512xf32>
    %c5_i32 = arith.constant 5 : i32
    %20 = tpu.dynamic_rotate %18 by %c5_i32 dim 1 : vector<2x512xf32>, i32 -> vector<2x512xf32>
    %c-5_i32 = arith.constant -5 : i32
    %21 = vector.broadcast %c-5_i32 : i32 to vector<2x512xi32>
    %22 = arith.addi %1, %21 : vector<2x512xi32>
    %c0_i32_5 = arith.constant 0 : i32
    %23 = vector.broadcast %c0_i32_5 : i32 to vector<2x512xi32>
    %24 = arith.cmpi sge, %22, %23 : vector<2x512xi32>
    %c-5_i32_6 = arith.constant -5 : i32
    %25 = vector.broadcast %c-5_i32_6 : i32 to vector<2x512xi32>
    %26 = arith.addi %1, %25 : vector<2x512xi32>
    %c512_i32 = arith.constant 512 : i32
    %27 = vector.broadcast %c512_i32 : i32 to vector<2x512xi32>
    %28 = arith.cmpi slt, %26, %27 : vector<2x512xi32>
    %29 = arith.andi %24, %28 : vector<2x512xi1>
    %cst_7 = arith.constant 0.000000e+00 : f32
    %30 = vector.broadcast %cst_7 : f32 to vector<2x512xf32>
    %31 = arith.select %29, %20, %30 : vector<2x512xi1>, vector<2x512xf32>
    %cst_8 = arith.constant 0.00102838012 : f32
    %32 = vector.broadcast %cst_8 : f32 to vector<2x512xf32>
    %33 = arith.mulf %31, %32 : vector<2x512xf32>
    %34 = arith.addf %19, %33 : vector<2x512xf32>
    %c4_i32 = arith.constant 4 : i32
    %35 = tpu.dynamic_rotate %18 by %c4_i32 dim 1 : vector<2x512xf32>, i32 -> vector<2x512xf32>
    %c-4_i32 = arith.constant -4 : i32
    %36 = vector.broadcast %c-4_i32 : i32 to vector<2x512xi32>
    %37 = arith.addi %1, %36 : vector<2x512xi32>
    %c0_i32_9 = arith.constant 0 : i32
    %38 = vector.broadcast %c0_i32_9 : i32 to vector<2x512xi32>
    %39 = arith.cmpi sge, %37, %38 : vector<2x512xi32>
    %c-4_i32_10 = arith.constant -4 : i32
    %40 = vector.broadcast %c-4_i32_10 : i32 to vector<2x512xi32>
    %41 = arith.addi %1, %40 : vector<2x512xi32>
    %c512_i32_11 = arith.constant 512 : i32
    %42 = vector.broadcast %c512_i32_11 : i32 to vector<2x512xi32>
    %43 = arith.cmpi slt, %41, %42 : vector<2x512xi32>
    %44 = arith.andi %39, %43 : vector<2x512xi1>
    %cst_12 = arith.constant 0.000000e+00 : f32
    %45 = vector.broadcast %cst_12 : f32 to vector<2x512xf32>
    %46 = arith.select %44, %35, %45 : vector<2x512xi1>, vector<2x512xf32>
    %cst_13 = arith.constant 0.00759875821 : f32
    %47 = vector.broadcast %cst_13 : f32 to vector<2x512xf32>
    %48 = arith.mulf %46, %47 : vector<2x512xf32>
    %49 = arith.addf %34, %48 : vector<2x512xf32>
    %c3_i32 = arith.constant 3 : i32
    %50 = tpu.dynamic_rotate %18 by %c3_i32 dim 1 : vector<2x512xf32>, i32 -> vector<2x512xf32>
    %c-3_i32 = arith.constant -3 : i32
    %51 = vector.broadcast %c-3_i32 : i32 to vector<2x512xi32>
    %52 = arith.addi %1, %51 : vector<2x512xi32>
    %c0_i32_14 = arith.constant 0 : i32
    %53 = vector.broadcast %c0_i32_14 : i32 to vector<2x512xi32>
    %54 = arith.cmpi sge, %52, %53 : vector<2x512xi32>
    %c-3_i32_15 = arith.constant -3 : i32
    %55 = vector.broadcast %c-3_i32_15 : i32 to vector<2x512xi32>
    %56 = arith.addi %1, %55 : vector<2x512xi32>
    %c512_i32_16 = arith.constant 512 : i32
    %57 = vector.broadcast %c512_i32_16 : i32 to vector<2x512xi32>
    %58 = arith.cmpi slt, %56, %57 : vector<2x512xi32>
    %59 = arith.andi %54, %58 : vector<2x512xi1>
    %cst_17 = arith.constant 0.000000e+00 : f32
    %60 = vector.broadcast %cst_17 : f32 to vector<2x512xf32>
    %61 = arith.select %59, %50, %60 : vector<2x512xi1>, vector<2x512xf32>
    %cst_18 = arith.constant 0.0360007733 : f32
    %62 = vector.broadcast %cst_18 : f32 to vector<2x512xf32>
    %63 = arith.mulf %61, %62 : vector<2x512xf32>
    %64 = arith.addf %49, %63 : vector<2x512xf32>
    %c2_i32 = arith.constant 2 : i32
    %65 = tpu.dynamic_rotate %18 by %c2_i32 dim 1 : vector<2x512xf32>, i32 -> vector<2x512xf32>
    %c-2_i32 = arith.constant -2 : i32
    %66 = vector.broadcast %c-2_i32 : i32 to vector<2x512xi32>
    %67 = arith.addi %1, %66 : vector<2x512xi32>
    %c0_i32_19 = arith.constant 0 : i32
    %68 = vector.broadcast %c0_i32_19 : i32 to vector<2x512xi32>
    %69 = arith.cmpi sge, %67, %68 : vector<2x512xi32>
    %c-2_i32_20 = arith.constant -2 : i32
    %70 = vector.broadcast %c-2_i32_20 : i32 to vector<2x512xi32>
    %71 = arith.addi %1, %70 : vector<2x512xi32>
    %c512_i32_21 = arith.constant 512 : i32
    %72 = vector.broadcast %c512_i32_21 : i32 to vector<2x512xi32>
    %73 = arith.cmpi slt, %71, %72 : vector<2x512xi32>
    %74 = arith.andi %69, %73 : vector<2x512xi1>
    %cst_22 = arith.constant 0.000000e+00 : f32
    %75 = vector.broadcast %cst_22 : f32 to vector<2x512xf32>
    %76 = arith.select %74, %65, %75 : vector<2x512xi1>, vector<2x512xf32>
    %cst_23 = arith.constant 0.109360687 : f32
    %77 = vector.broadcast %cst_23 : f32 to vector<2x512xf32>
    %78 = arith.mulf %76, %77 : vector<2x512xf32>
    %79 = arith.addf %64, %78 : vector<2x512xf32>
    %c1_i32_24 = arith.constant 1 : i32
    %80 = tpu.dynamic_rotate %18 by %c1_i32_24 dim 1 : vector<2x512xf32>, i32 -> vector<2x512xf32>
    %c-1_i32 = arith.constant -1 : i32
    %81 = vector.broadcast %c-1_i32 : i32 to vector<2x512xi32>
    %82 = arith.addi %1, %81 : vector<2x512xi32>
    %c0_i32_25 = arith.constant 0 : i32
    %83 = vector.broadcast %c0_i32_25 : i32 to vector<2x512xi32>
    %84 = arith.cmpi sge, %82, %83 : vector<2x512xi32>
    %c-1_i32_26 = arith.constant -1 : i32
    %85 = vector.broadcast %c-1_i32_26 : i32 to vector<2x512xi32>
    %86 = arith.addi %1, %85 : vector<2x512xi32>
    %c512_i32_27 = arith.constant 512 : i32
    %87 = vector.broadcast %c512_i32_27 : i32 to vector<2x512xi32>
    %88 = arith.cmpi slt, %86, %87 : vector<2x512xi32>
    %89 = arith.andi %84, %88 : vector<2x512xi1>
    %cst_28 = arith.constant 0.000000e+00 : f32
    %90 = vector.broadcast %cst_28 : f32 to vector<2x512xf32>
    %91 = arith.select %89, %80, %90 : vector<2x512xi1>, vector<2x512xf32>
    %cst_29 = arith.constant 0.213005543 : f32
    %92 = vector.broadcast %cst_29 : f32 to vector<2x512xf32>
    %93 = arith.mulf %91, %92 : vector<2x512xf32>
    %94 = arith.addf %79, %93 : vector<2x512xf32>
    %c0_i32_30 = arith.constant 0 : i32
    %95 = vector.broadcast %c0_i32_30 : i32 to vector<2x512xi32>
    %96 = arith.addi %1, %95 : vector<2x512xi32>
    %c0_i32_31 = arith.constant 0 : i32
    %97 = vector.broadcast %c0_i32_31 : i32 to vector<2x512xi32>
    %98 = arith.cmpi sge, %96, %97 : vector<2x512xi32>
    %c0_i32_32 = arith.constant 0 : i32
    %99 = vector.broadcast %c0_i32_32 : i32 to vector<2x512xi32>
    %100 = arith.addi %1, %99 : vector<2x512xi32>
    %c512_i32_33 = arith.constant 512 : i32
    %101 = vector.broadcast %c512_i32_33 : i32 to vector<2x512xi32>
    %102 = arith.cmpi slt, %100, %101 : vector<2x512xi32>
    %103 = arith.andi %98, %102 : vector<2x512xi1>
    %cst_34 = arith.constant 0.000000e+00 : f32
    %104 = vector.broadcast %cst_34 : f32 to vector<2x512xf32>
    %105 = arith.select %103, %18, %104 : vector<2x512xi1>, vector<2x512xf32>
    %cst_35 = arith.constant 0.266011715 : f32
    %106 = vector.broadcast %cst_35 : f32 to vector<2x512xf32>
    %107 = arith.mulf %105, %106 : vector<2x512xf32>
    %108 = arith.addf %94, %107 : vector<2x512xf32>
    %c511_i32_36 = arith.constant 511 : i32
    %109 = tpu.dynamic_rotate %18 by %c511_i32_36 dim 1 : vector<2x512xf32>, i32 -> vector<2x512xf32>
    %c1_i32_37 = arith.constant 1 : i32
    %110 = vector.broadcast %c1_i32_37 : i32 to vector<2x512xi32>
    %111 = arith.addi %1, %110 : vector<2x512xi32>
    %c0_i32_38 = arith.constant 0 : i32
    %112 = vector.broadcast %c0_i32_38 : i32 to vector<2x512xi32>
    %113 = arith.cmpi sge, %111, %112 : vector<2x512xi32>
    %c1_i32_39 = arith.constant 1 : i32
    %114 = vector.broadcast %c1_i32_39 : i32 to vector<2x512xi32>
    %115 = arith.addi %1, %114 : vector<2x512xi32>
    %c512_i32_40 = arith.constant 512 : i32
    %116 = vector.broadcast %c512_i32_40 : i32 to vector<2x512xi32>
    %117 = arith.cmpi slt, %115, %116 : vector<2x512xi32>
    %118 = arith.andi %113, %117 : vector<2x512xi1>
    %cst_41 = arith.constant 0.000000e+00 : f32
    %119 = vector.broadcast %cst_41 : f32 to vector<2x512xf32>
    %120 = arith.select %118, %109, %119 : vector<2x512xi1>, vector<2x512xf32>
    %cst_42 = arith.constant 0.213005543 : f32
    %121 = vector.broadcast %cst_42 : f32 to vector<2x512xf32>
    %122 = arith.mulf %120, %121 : vector<2x512xf32>
    %123 = arith.addf %108, %122 : vector<2x512xf32>
    %c510_i32 = arith.constant 510 : i32
    %124 = tpu.dynamic_rotate %18 by %c510_i32 dim 1 : vector<2x512xf32>, i32 -> vector<2x512xf32>
    %c2_i32_43 = arith.constant 2 : i32
    %125 = vector.broadcast %c2_i32_43 : i32 to vector<2x512xi32>
    %126 = arith.addi %1, %125 : vector<2x512xi32>
    %c0_i32_44 = arith.constant 0 : i32
    %127 = vector.broadcast %c0_i32_44 : i32 to vector<2x512xi32>
    %128 = arith.cmpi sge, %126, %127 : vector<2x512xi32>
    %c2_i32_45 = arith.constant 2 : i32
    %129 = vector.broadcast %c2_i32_45 : i32 to vector<2x512xi32>
    %130 = arith.addi %1, %129 : vector<2x512xi32>
    %c512_i32_46 = arith.constant 512 : i32
    %131 = vector.broadcast %c512_i32_46 : i32 to vector<2x512xi32>
    %132 = arith.cmpi slt, %130, %131 : vector<2x512xi32>
    %133 = arith.andi %128, %132 : vector<2x512xi1>
    %cst_47 = arith.constant 0.000000e+00 : f32
    %134 = vector.broadcast %cst_47 : f32 to vector<2x512xf32>
    %135 = arith.select %133, %124, %134 : vector<2x512xi1>, vector<2x512xf32>
    %cst_48 = arith.constant 0.109360687 : f32
    %136 = vector.broadcast %cst_48 : f32 to vector<2x512xf32>
    %137 = arith.mulf %135, %136 : vector<2x512xf32>
    %138 = arith.addf %123, %137 : vector<2x512xf32>
    %c509_i32 = arith.constant 509 : i32
    %139 = tpu.dynamic_rotate %18 by %c509_i32 dim 1 : vector<2x512xf32>, i32 -> vector<2x512xf32>
    %c3_i32_49 = arith.constant 3 : i32
    %140 = vector.broadcast %c3_i32_49 : i32 to vector<2x512xi32>
    %141 = arith.addi %1, %140 : vector<2x512xi32>
    %c0_i32_50 = arith.constant 0 : i32
    %142 = vector.broadcast %c0_i32_50 : i32 to vector<2x512xi32>
    %143 = arith.cmpi sge, %141, %142 : vector<2x512xi32>
    %c3_i32_51 = arith.constant 3 : i32
    %144 = vector.broadcast %c3_i32_51 : i32 to vector<2x512xi32>
    %145 = arith.addi %1, %144 : vector<2x512xi32>
    %c512_i32_52 = arith.constant 512 : i32
    %146 = vector.broadcast %c512_i32_52 : i32 to vector<2x512xi32>
    %147 = arith.cmpi slt, %145, %146 : vector<2x512xi32>
    %148 = arith.andi %143, %147 : vector<2x512xi1>
    %cst_53 = arith.constant 0.000000e+00 : f32
    %149 = vector.broadcast %cst_53 : f32 to vector<2x512xf32>
    %150 = arith.select %148, %139, %149 : vector<2x512xi1>, vector<2x512xf32>
    %cst_54 = arith.constant 0.0360007733 : f32
    %151 = vector.broadcast %cst_54 : f32 to vector<2x512xf32>
    %152 = arith.mulf %150, %151 : vector<2x512xf32>
    %153 = arith.addf %138, %152 : vector<2x512xf32>
    %c508_i32 = arith.constant 508 : i32
    %154 = tpu.dynamic_rotate %18 by %c508_i32 dim 1 : vector<2x512xf32>, i32 -> vector<2x512xf32>
    %c4_i32_55 = arith.constant 4 : i32
    %155 = vector.broadcast %c4_i32_55 : i32 to vector<2x512xi32>
    %156 = arith.addi %1, %155 : vector<2x512xi32>
    %c0_i32_56 = arith.constant 0 : i32
    %157 = vector.broadcast %c0_i32_56 : i32 to vector<2x512xi32>
    %158 = arith.cmpi sge, %156, %157 : vector<2x512xi32>
    %c4_i32_57 = arith.constant 4 : i32
    %159 = vector.broadcast %c4_i32_57 : i32 to vector<2x512xi32>
    %160 = arith.addi %1, %159 : vector<2x512xi32>
    %c512_i32_58 = arith.constant 512 : i32
    %161 = vector.broadcast %c512_i32_58 : i32 to vector<2x512xi32>
    %162 = arith.cmpi slt, %160, %161 : vector<2x512xi32>
    %163 = arith.andi %158, %162 : vector<2x512xi1>
    %cst_59 = arith.constant 0.000000e+00 : f32
    %164 = vector.broadcast %cst_59 : f32 to vector<2x512xf32>
    %165 = arith.select %163, %154, %164 : vector<2x512xi1>, vector<2x512xf32>
    %cst_60 = arith.constant 0.00759875821 : f32
    %166 = vector.broadcast %cst_60 : f32 to vector<2x512xf32>
    %167 = arith.mulf %165, %166 : vector<2x512xf32>
    %168 = arith.addf %153, %167 : vector<2x512xf32>
    %c507_i32 = arith.constant 507 : i32
    %169 = tpu.dynamic_rotate %18 by %c507_i32 dim 1 : vector<2x512xf32>, i32 -> vector<2x512xf32>
    %c5_i32_61 = arith.constant 5 : i32
    %170 = vector.broadcast %c5_i32_61 : i32 to vector<2x512xi32>
    %171 = arith.addi %1, %170 : vector<2x512xi32>
    %c0_i32_62 = arith.constant 0 : i32
    %172 = vector.broadcast %c0_i32_62 : i32 to vector<2x512xi32>
    %173 = arith.cmpi sge, %171, %172 : vector<2x512xi32>
    %c5_i32_63 = arith.constant 5 : i32
    %174 = vector.broadcast %c5_i32_63 : i32 to vector<2x512xi32>
    %175 = arith.addi %1, %174 : vector<2x512xi32>
    %c512_i32_64 = arith.constant 512 : i32
    %176 = vector.broadcast %c512_i32_64 : i32 to vector<2x512xi32>
    %177 = arith.cmpi slt, %175, %176 : vector<2x512xi32>
    %178 = arith.andi %173, %177 : vector<2x512xi1>
    %cst_65 = arith.constant 0.000000e+00 : f32
    %179 = vector.broadcast %cst_65 : f32 to vector<2x512xf32>
    %180 = arith.select %178, %169, %179 : vector<2x512xi1>, vector<2x512xf32>
    %cst_66 = arith.constant 0.00102838012 : f32
    %181 = vector.broadcast %cst_66 : f32 to vector<2x512xf32>
    %182 = arith.mulf %180, %181 : vector<2x512xf32>
    %183 = arith.addf %168, %182 : vector<2x512xf32>
    %c0_67 = arith.constant 0 : index
    %184 = memref.load %arg1[%c0_67] : memref<1xf32, #tpu.memory_space<smem>>
    %185 = tpu.iota {dimensions = array<i32: 1>} : vector<2x512xi32>
    %cst_68 = arith.constant 0.000000e+00 : f32
    %186 = arith.subf %cst_68, %184 : f32
    %cst_69 = arith.constant 2.500000e-01 : f32
    %187 = arith.mulf %186, %cst_69 : f32
    %188 = vector.broadcast %184 : f32 to vector<2x512xf32>
    %189 = arith.cmpf ogt, %183, %188 : vector<2x512xf32>
    %190 = arith.extui %189 : vector<2x512xi1> to vector<2x512xi32>
    %191 = arith.sitofp %190 : vector<2x512xi32> to vector<2x512xf32>
    %192 = vector.broadcast %187 : f32 to vector<2x512xf32>
    %193 = arith.cmpf olt, %183, %192 : vector<2x512xf32>
    %194 = arith.extui %193 : vector<2x512xi1> to vector<2x512xi32>
    %195 = arith.sitofp %194 : vector<2x512xi32> to vector<2x512xf32>
    %c511_i32_70 = arith.constant 511 : i32
    %196 = tpu.dynamic_rotate %191 by %c511_i32_70 dim 1 : vector<2x512xf32>, i32 -> vector<2x512xf32>
    %197 = arith.subf %196, %191 : vector<2x512xf32>
    %c511_i32_71 = arith.constant 511 : i32
    %198 = tpu.dynamic_rotate %195 by %c511_i32_71 dim 1 : vector<2x512xf32>, i32 -> vector<2x512xf32>
    %199 = arith.subf %198, %195 : vector<2x512xf32>
    %c511_i32_72 = arith.constant 511 : i32
    %200 = vector.broadcast %c511_i32_72 : i32 to vector<2x512xi32>
    %201 = arith.cmpi eq, %185, %200 : vector<2x512xi32>
    %cst_73 = arith.constant 0.000000e+00 : f32
    %202 = vector.broadcast %cst_73 : f32 to vector<2x512xf32>
    %203 = arith.select %201, %202, %197 : vector<2x512xi1>, vector<2x512xf32>
    %204 = arith.fptosi %203 : vector<2x512xf32> to vector<2x512xi8>
    %cst_74 = arith.constant 0.000000e+00 : f32
    %205 = vector.broadcast %cst_74 : f32 to vector<2x512xf32>
    %206 = arith.select %201, %205, %199 : vector<2x512xi1>, vector<2x512xf32>
    %207 = arith.fptosi %206 : vector<2x512xf32> to vector<2x512xi8>
    %c0_75 = arith.constant 0 : index
    %c0_76 = arith.constant 0 : index
    %208 = vector.load %arg3[%c0_75, %c0_76] : memref<2x512xi8, #tpu.memory_space<vmem>>, vector<2x512xi8>
    tpu.vector_store %arg3[%c0_75, %c0_76], %204 {strides = array<i32>} : memref<2x512xi8, #tpu.memory_space<vmem>>, vector<2x512xi8>,
    %c0_77 = arith.constant 0 : index
    %c0_78 = arith.constant 0 : index
    %209 = vector.load %arg4[%c0_77, %c0_78] : memref<2x512xi8, #tpu.memory_space<vmem>>, vector<2x512xi8>
    tpu.vector_store %arg4[%c0_77, %c0_78], %207 {strides = array<i32>} : memref<2x512xi8, #tpu.memory_space<vmem>>, vector<2x512xi8>,
    return
  }
  func.func @transform_0(%arg0: i32) -> i32 {
    %c0_i32 = arith.constant 0 : i32
    %c0_i32_0 = arith.constant 0 : i32
    return %c0_i32 : i32
  }
  func.func @transform_1(%arg0: i32) -> (i32, i32) {
    %c0_i32 = arith.constant 0 : i32
    %c0_i32_0 = arith.constant 0 : i32
    %c0_i32_1 = arith.constant 0 : i32
    return %c0_i32, %c0_i32_0 : i32, i32
  }
  func.func @transform_2(%arg0: i32) -> (i32, i32) {
    %c0_i32 = arith.constant 0 : i32
    %c0_i32_0 = arith.constant 0 : i32
    %c0_i32_1 = arith.constant 0 : i32
    return %c0_i32, %c0_i32_0 : i32, i32
  }
  func.func @transform_3(%arg0: i32) -> (i32, i32) {
    %c0_i32 = arith.constant 0 : i32
    %c0_i32_0 = arith.constant 0 : i32
    %c0_i32_1 = arith.constant 0 : i32
    return %c0_i32, %c0_i32_0 : i32, i32
  }
}

</mosaic_0001>

<llo_original>
// kernel: tpu_custom_call.1
$region0: #{tpu_custom_call.1}
  #allocation0 [shape = 'u32[]', space=smem, size = 0x4, offset = 0x4, fixed_abs, tag = 'smem constant byte address 0x4 - core index']
  #allocation1 [shape = 'u32[144,128]{1,0:T(1,128)}', space=vmem, size = 0x12000, scoped, tag = 'internal scratch']
  #allocation2 [shape = 'f32[1]{0:T(128)S(6)}', space=smem, size = 0x200, scoped, tag = 'scoped memory for tpu_custom_call.1']
  %s0 = inlined_call_operand.<no memory space> [shape: f32[1], index: 0, kind: input, shape index: {}]
  %s1 = inlined_call_operand.hbm [shape: f32[2,512], index: 1, kind: input, shape index: {}]
  %s2 = inlined_call_operand.hbm [shape: s8[2,512], index: 2, kind: output, shape index: {0}]
  %s3 = inlined_call_operand.hbm [shape: s8[2,512], index: 3, kind: output, shape index: {1}]
  %4 = xla_tuple %s2, %s3
  %s5 = sld [smem:[#allocation0]]
  $region30: #{tpu_custom_call.1} parent=0
    _
  %s7 = ssub.s32 1, %s5
  %s8 = scalar_select 0, %s7, %s5
  %9 = sst [smem:[#allocation2]] %s0
  $region1: #{tpu_custom_call.1} parent=0
    #allocation3 [shape = 'u8[4096]{0}', space=vmem, size = 0x1000, scoped, tag = 'input window, operand 1, single buffered']
    #allocation4 [shape = 's32[1]{0}', space=sflag, size = 0x4, scoped, tag = 'scoped memory for tpu_custom_call.1']
    #allocation5 [shape = 's32[1]{0}', space=sflag, size = 0x4, scoped, tag = 'scoped memory for tpu_custom_call.1']
    #allocation6 [shape = 'u8[2048]{0}', space=vmem, size = 0x800, scoped, tag = 'output window, operand 0, single buffered']
    #allocation7 [shape = 'u8[2048]{0}', space=vmem, size = 0x800, scoped, tag = 'output window, operand 1, single buffered']
    #allocation8 [shape = 's32[1]{0}', space=sflag, size = 0x4, scoped, tag = 'scoped memory for tpu_custom_call.1']
    %10 = vsyncpa [#allocation4], 0
    %11 = vsyncpa [#allocation5], 0
    %12 = vsyncpa [#allocation8], 0
    // Predicated region
    $region2: #{tpu_custom_call.1} parent=1 // pred_check
      _
    $region3: #{tpu_custom_call.1} parent=1 // pred_check_branch
      %14 = sbr.rel (0) target = $region5
    $region4: #{tpu_custom_call.1} parent=1 // pred_region
      _
    $region5: #{tpu_custom_call.1} parent=1 // pred_fallthru
      _
    // Predicated region
    $region6: #{tpu_custom_call.1} parent=1 // pred_check
      _
    $region7: #{tpu_custom_call.1} parent=1 // pred_check_branch
      %16 = sbr.rel (0) target = $region9
    $region8: #{tpu_custom_call.1} parent=1 // pred_region
      %s18 = ssub.s32 128, 128
      %19 = vsyncadd [#allocation4], %s18
      %s21 = sshll.u32 [#allocation3], 4
      %s22 = int_to_ptr.vmem [resolvable:$true] %s21
      %24 = dma.hbm_to_vmem [thread:$0]  %s1, 128, %s22, [#allocation4]
    $region9: #{tpu_custom_call.1} parent=1 // pred_fallthru
      _
    // Predicated region
    $region10: #{tpu_custom_call.1} parent=1 // pred_check
      _
    $region11: #{tpu_custom_call.1} parent=1 // pred_check_branch
      %26 = sbr.rel (0) target = $region13
    $region12: #{tpu_custom_call.1} parent=1 // pred_region
      %27 = dma.done [#allocation4], 128
    $region13: #{tpu_custom_call.1} parent=1 // pred_fallthru
      _
    %v28 = vld [vmem:[#allocation3] sm:$0xff]
    %v29 = vlaneseq
    %v30 = vand.u32 %v29, 127
    %v31 = vadd.s32 %v30, 128
    %v32 = vadd.s32 %v30, 256
    %v33 = vadd.s32 %v30, 384
    %v35 = vcombine.high %v28, %v28
    %v37 = vunpack.c.l.s4 1983009808
    %v38 = vunpack.c.0.s8 %v37
    %v39 = vlaneseq
    %v40 = vshrl.u32 %v39, 7
    %v41 = vsub.s32 %v38, %v40
    %v42 = vrot.slane %v28, %v41
    %v44 = vunpack.c.l.s4 1983009808
    %v45 = vunpack.c.0.s8 %v44
    %v46 = vlaneseq
    %v47 = vshrl.u32 %v46, 7
    %v48 = vsub.s32 %v45, %v47
    %v49 = vrot.slane %v35, %v48
    %v50 = vcombine.high %v42, %v42
    %v51 = vcombine.high %v49, %v49
    %56 = vrot.lane.b32.xlu0 %v42, 127
    %v57 = vpop.permute.xlu0 %56
    %58 = vrot.lane.b32.xlu0 %v50, 127
    %v59 = vpop.permute.xlu0 %58
    %60 = vrot.lane.b32.xlu0 %v49, 127
    %v61 = vpop.permute.xlu0 %60
    %62 = vrot.lane.b32.xlu0 %v51, 127
    %v63 = vpop.permute.xlu0 %62
    %vm64 = vcmp.lt.s32.totalorder %v30, 127
    %v65 = vsel %vm64, %v61, %v63
    %v66 = vsel %vm64, %v59, %v61
    %v67 = vsel %vm64, %v57, %v59
    %v68 = vsel %vm64, %v63, %v57
    %69 = vrot.lane.b32.xlu0 %v42, 1
    %v70 = vpop.permute.xlu0 %69
    %71 = vrot.lane.b32.xlu0 %v50, 1
    %v72 = vpop.permute.xlu0 %71
    %73 = vrot.lane.b32.xlu0 %v49, 1
    %v74 = vpop.permute.xlu0 %73
    %75 = vrot.lane.b32.xlu0 %v51, 1
    %v76 = vpop.permute.xlu0 %75
    %vm77 = vcmp.lt.s32.totalorder %v30, 1
    %v78 = vsel %vm77, %v74, %v76
    %v79 = vsel %vm77, %v72, %v74
    %v80 = vsel %vm77, %v70, %v72
    %v81 = vsel %vm77, %v76, %v70
    %vm82 = vcmp.eq.s32.totalorder %v30, 0
    %vm83 = vcmp.eq.s32.totalorder %v31, 0
    %vm84 = vcmp.eq.s32.totalorder %v32, 0
    %vm85 = vcmp.eq.s32.totalorder %v33, 0
    %v86 = vsub.f32 %v67, %v42
    %v87 = vsub.f32 %v66, %v50
    %v88 = vsub.f32 %v65, %v49
    %v89 = vsub.f32 %v68, %v51
    %v90 = vmul.f32 %v86, 0.2
    %v91 = vmul.f32 %v87, 0.2
    %v92 = vmul.f32 %v88, 0.2
    %v93 = vmul.f32 %v89, 0.2
    %vm94 = vcmp.eq.s32.totalorder %v30, 511
    %vm95 = vcmp.eq.s32.totalorder %v31, 511
    %vm96 = vcmp.eq.s32.totalorder %v32, 511
    %vm97 = vcmp.eq.s32.totalorder %v33, 511
    %v102 = vcombine.low %v81, %v80
    %v103 = vcombine.low %v79, %v78
    %v105 = vunpack.c.l.s4 1983009808
    %v106 = vunpack.c.0.s8 %v105
    %v107 = vlaneseq
    %v108 = vshrl.u32 %v107, 7
    %v109 = vsub.s32 %v106, %v108
    %v110 = vrot.slane %v102, %v109
    %v112 = vunpack.c.l.s4 1983009808
    %v113 = vunpack.c.0.s8 %v112
    %v114 = vlaneseq
    %v115 = vshrl.u32 %v114, 7
    %v116 = vsub.s32 %v113, %v115
    %v117 = vrot.slane %v103, %v116
    %v118 = vcombine.low %v110, %v117
    %v120 = vsub.f32 %v28, %v118
    %v121 = vmul.f32 %v120, 0.2
    %v122 = vsub.f32 %v67, %v81
    %v123 = vsub.f32 %v66, %v80
    %v124 = vsub.f32 %v65, %v79
    %v125 = vsub.f32 %v68, %v78
    %v126 = vmul.f32 %v122, 0.1
    %v127 = vmul.f32 %v123, 0.1
    %v128 = vmul.f32 %v124, 0.1
    %v129 = vmul.f32 %v125, 0.1
    %v131 = vcombine.high %v121, %v121
    %v133 = vunpack.c.l.s4 1983009808
    %v134 = vunpack.c.0.s8 %v133
    %v135 = vlaneseq
    %v136 = vshrl.u32 %v135, 7
    %v137 = vsub.s32 %v134, %v136
    %v138 = vrot.slane %v121, %v137
    %v140 = vunpack.c.l.s4 1983009808
    %v141 = vunpack.c.0.s8 %v140
    %v142 = vlaneseq
    %v143 = vshrl.u32 %v142, 7
    %v144 = vsub.s32 %v141, %v143
    %v145 = vrot.slane %v131, %v144
    %v146 = vcombine.high %v138, %v138
    %v147 = vcombine.high %v145, %v145
    %v152 = vsel %vm94, %v138, %v126
    %v153 = vsel %vm95, %v146, %v127
    %v154 = vsel %vm96, %v145, %v128
    %v155 = vsel %vm97, %v147, %v129
    %v156 = vsel %vm82, %v90, %v152
    %v157 = vsel %vm83, %v91, %v153
    %v158 = vsel %vm84, %v92, %v154
    %v159 = vsel %vm85, %v93, %v155
    %160 = vrot.lane.b32.xlu0 %v156, 5
    %v161 = vpop.permute.xlu0 %160
    %162 = vrot.lane.b32.xlu0 %v157, 5
    %v163 = vpop.permute.xlu0 %162
    %164 = vrot.lane.b32.xlu0 %v158, 5
    %v165 = vpop.permute.xlu0 %164
    %166 = vrot.lane.b32.xlu0 %v159, 5
    %v167 = vpop.permute.xlu0 %166
    %vm168 = vcmp.lt.s32.totalorder %v30, 5
    %v169 = vsel %vm168, %v165, %v167
    %v170 = vsel %vm168, %v163, %v165
    %v171 = vsel %vm168, %v161, %v163
    %v172 = vsel %vm168, %v167, %v161
    %v173 = vadd.s32 %v30, 4294967291
    %v174 = vadd.s32 %v31, 4294967291
    %v175 = vadd.s32 %v32, 4294967291
    %v176 = vadd.s32 %v33, 4294967291
    %vm177 = vcmp.ge.s32.totalorder %v173, 0
    %vm178 = vcmp.ge.s32.totalorder %v174, 0
    %vm179 = vcmp.ge.s32.totalorder %v175, 0
    %vm180 = vcmp.ge.s32.totalorder %v176, 0
    %vm181 = vcmp.lt.s32.totalorder %v173, 512
    %vm182 = vcmp.lt.s32.totalorder %v174, 512
    %vm183 = vcmp.lt.s32.totalorder %v175, 512
    %vm184 = vcmp.lt.s32.totalorder %v176, 512
    %vm185 = vmand %vm177, %vm181
    %vm186 = vmand %vm178, %vm182
    %vm187 = vmand %vm179, %vm183
    %vm188 = vmand %vm180, %vm184
    %v189 = vsel %vm185, %v172, 0.0
    %v190 = vsel %vm186, %v171, 0.0
    %v191 = vsel %vm187, %v170, 0.0
    %v192 = vsel %vm188, %v169, 0.0
    %v193 = vmul.f32 %v189, 0.0010283801
    %v194 = vmul.f32 %v190, 0.0010283801
    %v195 = vmul.f32 %v191, 0.0010283801
    %v196 = vmul.f32 %v192, 0.0010283801
    %v197 = vadd.f32 %v193, 0.0
    %v198 = vadd.f32 %v194, 0.0
    %v199 = vadd.f32 %v195, 0.0
    %v200 = vadd.f32 %v196, 0.0
    %201 = vrot.lane.b32.xlu0 %v156, 4
    %v202 = vpop.permute.xlu0 %201
    %203 = vrot.lane.b32.xlu0 %v157, 4
    %v204 = vpop.permute.xlu0 %203
    %205 = vrot.lane.b32.xlu0 %v158, 4
    %v206 = vpop.permute.xlu0 %205
    %207 = vrot.lane.b32.xlu0 %v159, 4
    %v208 = vpop.permute.xlu0 %207
    %vm209 = vcmp.lt.s32.totalorder %v30, 4
    %v210 = vsel %vm209, %v206, %v208
    %v211 = vsel %vm209, %v204, %v206
    %v212 = vsel %vm209, %v202, %v204
    %v213 = vsel %vm209, %v208, %v202
    %v214 = vadd.s32 %v30, 4294967292
    %v215 = vadd.s32 %v31, 4294967292
    %v216 = vadd.s32 %v32, 4294967292
    %v217 = vadd.s32 %v33, 4294967292
    %vm218 = vcmp.ge.s32.totalorder %v214, 0
    %vm219 = vcmp.ge.s32.totalorder %v215, 0
    %vm220 = vcmp.ge.s32.totalorder %v216, 0
    %vm221 = vcmp.ge.s32.totalorder %v217, 0
    %vm222 = vcmp.lt.s32.totalorder %v214, 512
    %vm223 = vcmp.lt.s32.totalorder %v215, 512
    %vm224 = vcmp.lt.s32.totalorder %v216, 512
    %vm225 = vcmp.lt.s32.totalorder %v217, 512
    %vm226 = vmand %vm218, %vm222
    %vm227 = vmand %vm219, %vm223
    %vm228 = vmand %vm220, %vm224
    %vm229 = vmand %vm221, %vm225
    %v230 = vsel %vm226, %v213, 0.0
    %v231 = vsel %vm227, %v212, 0.0
    %v232 = vsel %vm228, %v211, 0.0
    %v233 = vsel %vm229, %v210, 0.0
    %v234 = vmul.f32 %v230, 0.007598758
    %v235 = vmul.f32 %v231, 0.007598758
    %v236 = vmul.f32 %v232, 0.007598758
    %v237 = vmul.f32 %v233, 0.007598758
    %v238 = vadd.f32 %v197, %v234
    %v239 = vadd.f32 %v198, %v235
    %v240 = vadd.f32 %v199, %v236
    %v241 = vadd.f32 %v200, %v237
    %242 = vrot.lane.b32.xlu0 %v156, 3
    %v243 = vpop.permute.xlu0 %242
    %244 = vrot.lane.b32.xlu0 %v157, 3
    %v245 = vpop.permute.xlu0 %244
    %246 = vrot.lane.b32.xlu0 %v158, 3
    %v247 = vpop.permute.xlu0 %246
    %248 = vrot.lane.b32.xlu0 %v159, 3
    %v249 = vpop.permute.xlu0 %248
    %vm250 = vcmp.lt.s32.totalorder %v30, 3
    %v251 = vsel %vm250, %v247, %v249
    %v252 = vsel %vm250, %v245, %v247
    %v253 = vsel %vm250, %v243, %v245
    %v254 = vsel %vm250, %v249, %v243
    %v255 = vadd.s32 %v30, 4294967293
    %v256 = vadd.s32 %v31, 4294967293
    %v257 = vadd.s32 %v32, 4294967293
    %v258 = vadd.s32 %v33, 4294967293
    %vm259 = vcmp.ge.s32.totalorder %v255, 0
    %vm260 = vcmp.ge.s32.totalorder %v256, 0
    %vm261 = vcmp.ge.s32.totalorder %v257, 0
    %vm262 = vcmp.ge.s32.totalorder %v258, 0
    %vm263 = vcmp.lt.s32.totalorder %v255, 512
    %vm264 = vcmp.lt.s32.totalorder %v256, 512
    %vm265 = vcmp.lt.s32.totalorder %v257, 512
    %vm266 = vcmp.lt.s32.totalorder %v258, 512
    %vm267 = vmand %vm259, %vm263
    %vm268 = vmand %vm260, %vm264
    %vm269 = vmand %vm261, %vm265
    %vm270 = vmand %vm262, %vm266
    %v271 = vsel %vm267, %v254, 0.0
    %v272 = vsel %vm268, %v253, 0.0
    %v273 = vsel %vm269, %v252, 0.0
    %v274 = vsel %vm270, %v251, 0.0
    %v275 = vmul.f32 %v271, 0.036000773
    %v276 = vmul.f32 %v272, 0.036000773
    %v277 = vmul.f32 %v273, 0.036000773
    %v278 = vmul.f32 %v274, 0.036000773
    %v279 = vadd.f32 %v238, %v275
    %v280 = vadd.f32 %v239, %v276
    %v281 = vadd.f32 %v240, %v277
    %v282 = vadd.f32 %v241, %v278
    %283 = vrot.lane.b32.xlu0 %v156, 2
    %v284 = vpop.permute.xlu0 %283
    %285 = vrot.lane.b32.xlu0 %v157, 2
    %v286 = vpop.permute.xlu0 %285
    %287 = vrot.lane.b32.xlu0 %v158, 2
    %v288 = vpop.permute.xlu0 %287
    %289 = vrot.lane.b32.xlu0 %v159, 2
    %v290 = vpop.permute.xlu0 %289
    %vm291 = vcmp.lt.s32.totalorder %v30, 2
    %v292 = vsel %vm291, %v288, %v290
    %v293 = vsel %vm291, %v286, %v288
    %v294 = vsel %vm291, %v284, %v286
    %v295 = vsel %vm291, %v290, %v284
    %v296 = vadd.s32 %v30, 4294967294
    %v297 = vadd.s32 %v31, 4294967294
    %v298 = vadd.s32 %v32, 4294967294
    %v299 = vadd.s32 %v33, 4294967294
    %vm300 = vcmp.ge.s32.totalorder %v296, 0
    %vm301 = vcmp.ge.s32.totalorder %v297, 0
    %vm302 = vcmp.ge.s32.totalorder %v298, 0
    %vm303 = vcmp.ge.s32.totalorder %v299, 0
    %vm304 = vcmp.lt.s32.totalorder %v296, 512
    %vm305 = vcmp.lt.s32.totalorder %v297, 512
    %vm306 = vcmp.lt.s32.totalorder %v298, 512
    %vm307 = vcmp.lt.s32.totalorder %v299, 512
    %vm308 = vmand %vm300, %vm304
    %vm309 = vmand %vm301, %vm305
    %vm310 = vmand %vm302, %vm306
    %vm311 = vmand %vm303, %vm307
    %v312 = vsel %vm308, %v295, 0.0
    %v313 = vsel %vm309, %v294, 0.0
    %v314 = vsel %vm310, %v293, 0.0
    %v315 = vsel %vm311, %v292, 0.0
    %v316 = vmul.f32 %v312, 0.10936069
    %v317 = vmul.f32 %v313, 0.10936069
    %v318 = vmul.f32 %v314, 0.10936069
    %v319 = vmul.f32 %v315, 0.10936069
    %v320 = vadd.f32 %v279, %v316
    %v321 = vadd.f32 %v280, %v317
    %v322 = vadd.f32 %v281, %v318
    %v323 = vadd.f32 %v282, %v319
    %324 = vrot.lane.b32.xlu0 %v156, 1
    %v325 = vpop.permute.xlu0 %324
    %326 = vrot.lane.b32.xlu0 %v157, 1
    %v327 = vpop.permute.xlu0 %326
    %328 = vrot.lane.b32.xlu0 %v158, 1
    %v329 = vpop.permute.xlu0 %328
    %330 = vrot.lane.b32.xlu0 %v159, 1
    %v331 = vpop.permute.xlu0 %330
    %v332 = vsel %vm77, %v329, %v331
    %v333 = vsel %vm77, %v327, %v329
    %v334 = vsel %vm77, %v325, %v327
    %v335 = vsel %vm77, %v331, %v325
    %v336 = vadd.s32 %v30, 4294967295
    %v337 = vadd.s32 %v31, 4294967295
    %v338 = vadd.s32 %v32, 4294967295
    %v339 = vadd.s32 %v33, 4294967295
    %vm340 = vcmp.ge.s32.totalorder %v336, 0
    %vm341 = vcmp.ge.s32.totalorder %v337, 0
    %vm342 = vcmp.ge.s32.totalorder %v338, 0
    %vm343 = vcmp.ge.s32.totalorder %v339, 0
    %vm344 = vcmp.lt.s32.totalorder %v336, 512
    %vm345 = vcmp.lt.s32.totalorder %v337, 512
    %vm346 = vcmp.lt.s32.totalorder %v338, 512
    %vm347 = vcmp.lt.s32.totalorder %v339, 512
    %vm348 = vmand %vm340, %vm344
    %vm349 = vmand %vm341, %vm345
    %vm350 = vmand %vm342, %vm346
    %vm351 = vmand %vm343, %vm347
    %v352 = vsel %vm348, %v335, 0.0
    %v353 = vsel %vm349, %v334, 0.0
    %v354 = vsel %vm350, %v333, 0.0
    %v355 = vsel %vm351, %v332, 0.0
    %v356 = vmul.f32 %v352, 0.21300554
    %v357 = vmul.f32 %v353, 0.21300554
    %v358 = vmul.f32 %v354, 0.21300554
    %v359 = vmul.f32 %v355, 0.21300554
    %v360 = vadd.f32 %v320, %v356
    %v361 = vadd.f32 %v321, %v357
    %v362 = vadd.f32 %v322, %v358
    %v363 = vadd.f32 %v323, %v359
    %vm364 = vcmp.ge.s32.totalorder %v30, 0
    %vm365 = vcmp.ge.s32.totalorder %v31, 0
    %vm366 = vcmp.ge.s32.totalorder %v32, 0
    %vm367 = vcmp.ge.s32.totalorder %v33, 0
    %vm368 = vcmp.lt.s32.totalorder %v30, 512
    %vm369 = vcmp.lt.s32.totalorder %v31, 512
    %vm370 = vcmp.lt.s32.totalorder %v32, 512
    %vm371 = vcmp.lt.s32.totalorder %v33, 512
    %vm372 = vmand %vm364, %vm368
    %vm373 = vmand %vm365, %vm369
    %vm374 = vmand %vm366, %vm370
    %vm375 = vmand %vm367, %vm371
    %v376 = vsel %vm372, %v156, 0.0
    %v377 = vsel %vm373, %v157, 0.0
    %v378 = vsel %vm374, %v158, 0.0
    %v379 = vsel %vm375, %v159, 0.0
    %v380 = vmul.f32 %v376, 0.26601171
    %v381 = vmul.f32 %v377, 0.26601171
    %v382 = vmul.f32 %v378, 0.26601171
    %v383 = vmul.f32 %v379, 0.26601171
    %v384 = vadd.f32 %v360, %v380
    %v385 = vadd.f32 %v361, %v381
    %v386 = vadd.f32 %v362, %v382
    %v387 = vadd.f32 %v363, %v383
    %388 = vrot.lane.b32.xlu0 %v156, 127
    %v389 = vpop.permute.xlu0 %388
    %390 = vrot.lane.b32.xlu0 %v157, 127
    %v391 = vpop.permute.xlu0 %390
    %392 = vrot.lane.b32.xlu0 %v158, 127
    %v393 = vpop.permute.xlu0 %392
    %394 = vrot.lane.b32.xlu0 %v159, 127
    %v395 = vpop.permute.xlu0 %394
    %v396 = vsel %vm64, %v393, %v395
    %v397 = vsel %vm64, %v391, %v393
    %v398 = vsel %vm64, %v389, %v391
    %v399 = vsel %vm64, %v395, %v389
    %v400 = vadd.s32 %v30, 1
    %v401 = vadd.s32 %v31, 1
    %v402 = vadd.s32 %v32, 1
    %v403 = vadd.s32 %v33, 1
    %vm404 = vcmp.ge.s32.totalorder %v400, 0
    %vm405 = vcmp.ge.s32.totalorder %v401, 0
    %vm406 = vcmp.ge.s32.totalorder %v402, 0
    %vm407 = vcmp.ge.s32.totalorder %v403, 0
    %vm408 = vcmp.lt.s32.totalorder %v400, 512
    %vm409 = vcmp.lt.s32.totalorder %v401, 512
    %vm410 = vcmp.lt.s32.totalorder %v402, 512
    %vm411 = vcmp.lt.s32.totalorder %v403, 512
    %vm412 = vmand %vm404, %vm408
    %vm413 = vmand %vm405, %vm409
    %vm414 = vmand %vm406, %vm410
    %vm415 = vmand %vm407, %vm411
    %v416 = vsel %vm412, %v398, 0.0
    %v417 = vsel %vm413, %v397, 0.0
    %v418 = vsel %vm414, %v396, 0.0
    %v419 = vsel %vm415, %v399, 0.0
    %v420 = vmul.f32 %v416, 0.21300554
    %v421 = vmul.f32 %v417, 0.21300554
    %v422 = vmul.f32 %v418, 0.21300554
    %v423 = vmul.f32 %v419, 0.21300554
    %v424 = vadd.f32 %v384, %v420
    %v425 = vadd.f32 %v385, %v421
    %v426 = vadd.f32 %v386, %v422
    %v427 = vadd.f32 %v387, %v423
    %428 = vrot.lane.b32.xlu0 %v156, 126
    %v429 = vpop.permute.xlu0 %428
    %430 = vrot.lane.b32.xlu0 %v157, 126
    %v431 = vpop.permute.xlu0 %430
    %432 = vrot.lane.b32.xlu0 %v158, 126
    %v433 = vpop.permute.xlu0 %432
    %434 = vrot.lane.b32.xlu0 %v159, 126
    %v435 = vpop.permute.xlu0 %434
    %vm436 = vcmp.lt.s32.totalorder %v30, 126
    %v437 = vsel %vm436, %v433, %v435
    %v438 = vsel %vm436, %v431, %v433
    %v439 = vsel %vm436, %v429, %v431
    %v440 = vsel %vm436, %v435, %v429
    %v441 = vadd.s32 %v30, 2
    %v442 = vadd.s32 %v31, 2
    %v443 = vadd.s32 %v32, 2
    %v444 = vadd.s32 %v33, 2
    %vm445 = vcmp.ge.s32.totalorder %v441, 0
    %vm446 = vcmp.ge.s32.totalorder %v442, 0
    %vm447 = vcmp.ge.s32.totalorder %v443, 0
    %vm448 = vcmp.ge.s32.totalorder %v444, 0
    %vm449 = vcmp.lt.s32.totalorder %v441, 512
    %vm450 = vcmp.lt.s32.totalorder %v442, 512
    %vm451 = vcmp.lt.s32.totalorder %v443, 512
    %vm452 = vcmp.lt.s32.totalorder %v444, 512
    %vm453 = vmand %vm445, %vm449
    %vm454 = vmand %vm446, %vm450
    %vm455 = vmand %vm447, %vm451
    %vm456 = vmand %vm448, %vm452
    %v457 = vsel %vm453, %v439, 0.0
    %v458 = vsel %vm454, %v438, 0.0
    %v459 = vsel %vm455, %v437, 0.0
    %v460 = vsel %vm456, %v440, 0.0
    %v461 = vmul.f32 %v457, 0.10936069
    %v462 = vmul.f32 %v458, 0.10936069
    %v463 = vmul.f32 %v459, 0.10936069
    %v464 = vmul.f32 %v460, 0.10936069
    %v465 = vadd.f32 %v424, %v461
    %v466 = vadd.f32 %v425, %v462
    %v467 = vadd.f32 %v426, %v463
    %v468 = vadd.f32 %v427, %v464
    %469 = vrot.lane.b32.xlu0 %v156, 125
    %v470 = vpop.permute.xlu0 %469
    %471 = vrot.lane.b32.xlu0 %v157, 125
    %v472 = vpop.permute.xlu0 %471
    %473 = vrot.lane.b32.xlu0 %v158, 125
    %v474 = vpop.permute.xlu0 %473
    %475 = vrot.lane.b32.xlu0 %v159, 125
    %v476 = vpop.permute.xlu0 %475
    %vm477 = vcmp.lt.s32.totalorder %v30, 125
    %v478 = vsel %vm477, %v474, %v476
    %v479 = vsel %vm477, %v472, %v474
    %v480 = vsel %vm477, %v470, %v472
    %v481 = vsel %vm477, %v476, %v470
    %v482 = vadd.s32 %v30, 3
    %v483 = vadd.s32 %v31, 3
    %v484 = vadd.s32 %v32, 3
    %v485 = vadd.s32 %v33, 3
    %vm486 = vcmp.ge.s32.totalorder %v482, 0
    %vm487 = vcmp.ge.s32.totalorder %v483, 0
    %vm488 = vcmp.ge.s32.totalorder %v484, 0
    %vm489 = vcmp.ge.s32.totalorder %v485, 0
    %vm490 = vcmp.lt.s32.totalorder %v482, 512
    %vm491 = vcmp.lt.s32.totalorder %v483, 512
    %vm492 = vcmp.lt.s32.totalorder %v484, 512
    %vm493 = vcmp.lt.s32.totalorder %v485, 512
    %vm494 = vmand %vm486, %vm490
    %vm495 = vmand %vm487, %vm491
    %vm496 = vmand %vm488, %vm492
    %vm497 = vmand %vm489, %vm493
    %v498 = vsel %vm494, %v480, 0.0
    %v499 = vsel %vm495, %v479, 0.0
    %v500 = vsel %vm496, %v478, 0.0
    %v501 = vsel %vm497, %v481, 0.0
    %v502 = vmul.f32 %v498, 0.036000773
    %v503 = vmul.f32 %v499, 0.036000773
    %v504 = vmul.f32 %v500, 0.036000773
    %v505 = vmul.f32 %v501, 0.036000773
    %v506 = vadd.f32 %v465, %v502
    %v507 = vadd.f32 %v466, %v503
    %v508 = vadd.f32 %v467, %v504
    %v509 = vadd.f32 %v468, %v505
    %510 = vrot.lane.b32.xlu0 %v156, 124
    %v511 = vpop.permute.xlu0 %510
    %512 = vrot.lane.b32.xlu0 %v157, 124
    %v513 = vpop.permute.xlu0 %512
    %514 = vrot.lane.b32.xlu0 %v158, 124
    %v515 = vpop.permute.xlu0 %514
    %516 = vrot.lane.b32.xlu0 %v159, 124
    %v517 = vpop.permute.xlu0 %516
    %vm518 = vcmp.lt.s32.totalorder %v30, 124
    %v519 = vsel %vm518, %v515, %v517
    %v520 = vsel %vm518, %v513, %v515
    %v521 = vsel %vm518, %v511, %v513
    %v522 = vsel %vm518, %v517, %v511
    %v523 = vadd.s32 %v30, 4
    %v524 = vadd.s32 %v31, 4
    %v525 = vadd.s32 %v32, 4
    %v526 = vadd.s32 %v33, 4
    %vm527 = vcmp.ge.s32.totalorder %v523, 0
    %vm528 = vcmp.ge.s32.totalorder %v524, 0
    %vm529 = vcmp.ge.s32.totalorder %v525, 0
    %vm530 = vcmp.ge.s32.totalorder %v526, 0
    %vm531 = vcmp.lt.s32.totalorder %v523, 512
    %vm532 = vcmp.lt.s32.totalorder %v524, 512
    %vm533 = vcmp.lt.s32.totalorder %v525, 512
    %vm534 = vcmp.lt.s32.totalorder %v526, 512
    %vm535 = vmand %vm527, %vm531
    %vm536 = vmand %vm528, %vm532
    %vm537 = vmand %vm529, %vm533
    %vm538 = vmand %vm530, %vm534
    %v539 = vsel %vm535, %v521, 0.0
    %v540 = vsel %vm536, %v520, 0.0
    %v541 = vsel %vm537, %v519, 0.0
    %v542 = vsel %vm538, %v522, 0.0
    %v543 = vmul.f32 %v539, 0.007598758
    %v544 = vmul.f32 %v540, 0.007598758
    %v545 = vmul.f32 %v541, 0.007598758
    %v546 = vmul.f32 %v542, 0.007598758
    %v547 = vadd.f32 %v506, %v543
    %v548 = vadd.f32 %v507, %v544
    %v549 = vadd.f32 %v508, %v545
    %v550 = vadd.f32 %v509, %v546
    %551 = vrot.lane.b32.xlu0 %v156, 123
    %v552 = vpop.permute.xlu0 %551
    %553 = vrot.lane.b32.xlu0 %v157, 123
    %v554 = vpop.permute.xlu0 %553
    %555 = vrot.lane.b32.xlu0 %v158, 123
    %v556 = vpop.permute.xlu0 %555
    %557 = vrot.lane.b32.xlu0 %v159, 123
    %v558 = vpop.permute.xlu0 %557
    %vm559 = vcmp.lt.s32.totalorder %v30, 123
    %v560 = vsel %vm559, %v556, %v558
    %v561 = vsel %vm559, %v554, %v556
    %v562 = vsel %vm559, %v552, %v554
    %v563 = vsel %vm559, %v558, %v552
    %v564 = vadd.s32 %v30, 5
    %v565 = vadd.s32 %v31, 5
    %v566 = vadd.s32 %v32, 5
    %v567 = vadd.s32 %v33, 5
    %vm568 = vcmp.ge.s32.totalorder %v564, 0
    %vm569 = vcmp.ge.s32.totalorder %v565, 0
    %vm570 = vcmp.ge.s32.totalorder %v566, 0
    %vm571 = vcmp.ge.s32.totalorder %v567, 0
    %vm572 = vcmp.lt.s32.totalorder %v564, 512
    %vm573 = vcmp.lt.s32.totalorder %v565, 512
    %vm574 = vcmp.lt.s32.totalorder %v566, 512
    %vm575 = vcmp.lt.s32.totalorder %v567, 512
    %vm576 = vmand %vm568, %vm572
    %vm577 = vmand %vm569, %vm573
    %vm578 = vmand %vm570, %vm574
    %vm579 = vmand %vm571, %vm575
    %v580 = vsel %vm576, %v562, 0.0
    %v581 = vsel %vm577, %v561, 0.0
    %v582 = vsel %vm578, %v560, 0.0
    %v583 = vsel %vm579, %v563, 0.0
    %v584 = vmul.f32 %v580, 0.0010283801
    %v585 = vmul.f32 %v581, 0.0010283801
    %v586 = vmul.f32 %v582, 0.0010283801
    %v587 = vmul.f32 %v583, 0.0010283801
    %v588 = vadd.f32 %v547, %v584
    %v589 = vadd.f32 %v548, %v585
    %v590 = vadd.f32 %v549, %v586
    %v591 = vadd.f32 %v550, %v587
    %s592 = sld [smem:[#allocation2]]
    %s593 = ssub.f32 0.0, %s592
    %s594 = smul.f32 %s593, 0.25
    %v595 = vstv %s592
    %vm596 = vcmp.gt.f32.partialorder %v588, %v595
    %vm597 = vcmp.gt.f32.partialorder %v589, %v595
    %vm598 = vcmp.gt.f32.partialorder %v590, %v595
    %vm599 = vcmp.gt.f32.partialorder %v591, %v595
    %v600 = vsel %vm596, 1, 0
    %v601 = vsel %vm597, 1, 0
    %v602 = vsel %vm598, 1, 0
    %v603 = vsel %vm599, 1, 0
    %v604 = vcvt.s32.f32 %v600
    %v605 = vcvt.s32.f32 %v601
    %v606 = vcvt.s32.f32 %v602
    %v607 = vcvt.s32.f32 %v603
    %v608 = vstv %s594
    %vm609 = vcmp.lt.f32.partialorder %v588, %v608
    %vm610 = vcmp.lt.f32.partialorder %v589, %v608
    %vm611 = vcmp.lt.f32.partialorder %v590, %v608
    %vm612 = vcmp.lt.f32.partialorder %v591, %v608
    %v613 = vsel %vm609, 1, 0
    %v614 = vsel %vm610, 1, 0
    %v615 = vsel %vm611, 1, 0
    %v616 = vsel %vm612, 1, 0
    %v617 = vcvt.s32.f32 %v613
    %v618 = vcvt.s32.f32 %v614
    %v619 = vcvt.s32.f32 %v615
    %v620 = vcvt.s32.f32 %v616
    %621 = vrot.lane.b32.xlu0 %v604, 127
    %v622 = vpop.permute.xlu0 %621
    %623 = vrot.lane.b32.xlu0 %v605, 127
    %v624 = vpop.permute.xlu0 %623
    %625 = vrot.lane.b32.xlu0 %v606, 127
    %v626 = vpop.permute.xlu0 %625
    %627 = vrot.lane.b32.xlu0 %v607, 127
    %v628 = vpop.permute.xlu0 %627
    %v629 = vsel %vm64, %v626, %v628
    %v630 = vsel %vm64, %v624, %v626
    %v631 = vsel %vm64, %v622, %v624
    %v632 = vsel %vm64, %v628, %v622
    %v633 = vsub.f32 %v631, %v604
    %v634 = vsub.f32 %v630, %v605
    %v635 = vsub.f32 %v629, %v606
    %v636 = vsub.f32 %v632, %v607
    %637 = vrot.lane.b32.xlu0 %v617, 127
    %v638 = vpop.permute.xlu0 %637
    %639 = vrot.lane.b32.xlu0 %v618, 127
    %v640 = vpop.permute.xlu0 %639
    %641 = vrot.lane.b32.xlu0 %v619, 127
    %v642 = vpop.permute.xlu0 %641
    %643 = vrot.lane.b32.xlu0 %v620, 127
    %v644 = vpop.permute.xlu0 %643
    %v645 = vsel %vm64, %v642, %v644
    %v646 = vsel %vm64, %v640, %v642
    %v647 = vsel %vm64, %v638, %v640
    %v648 = vsel %vm64, %v644, %v638
    %v649 = vsub.f32 %v647, %v617
    %v650 = vsub.f32 %v646, %v618
    %v651 = vsub.f32 %v645, %v619
    %v652 = vsub.f32 %v648, %v620
    %v653 = vsel %vm94, 0.0, %v633
    %v654 = vsel %vm95, 0.0, %v634
    %v655 = vsel %vm96, 0.0, %v635
    %v656 = vsel %vm97, 0.0, %v636
    %v657 = vtrunc.f32 %v653
    %v658 = vtrunc.f32 %v654
    %v659 = vtrunc.f32 %v655
    %v660 = vtrunc.f32 %v656
    %v661 = vpack.c.f32.eXmY %v657, %v657, 312
    %v665 = vpack.c.b8 %v661, %v661
    %v667 = vpack.c.f32.eXmY %v658, %v658, 312
    %v671 = vpack.c.b8 %v667, %v667
    %v673 = vpack.c.f32.eXmY %v659, %v659, 312
    %v677 = vpack.c.b8 %v673, %v673
    %v679 = vpack.c.f32.eXmY %v660, %v660, 312
    %v683 = vpack.c.b8 %v679, %v679
    %v685 = vsel %vm94, 0.0, %v649
    %v686 = vsel %vm95, 0.0, %v650
    %v687 = vsel %vm96, 0.0, %v651
    %v688 = vsel %vm97, 0.0, %v652
    %v689 = vtrunc.f32 %v685
    %v690 = vtrunc.f32 %v686
    %v691 = vtrunc.f32 %v687
    %v692 = vtrunc.f32 %v688
    %v693 = vpack.c.f32.eXmY %v689, %v689, 312
    %v697 = vpack.c.b8 %v693, %v693
    %v699 = vpack.c.f32.eXmY %v690, %v690, 312
    %v703 = vpack.c.b8 %v699, %v699
    %v705 = vpack.c.f32.eXmY %v691, %v691, 312
    %v709 = vpack.c.b8 %v705, %v705
    %v711 = vpack.c.f32.eXmY %v692, %v692, 312
    %v715 = vpack.c.b8 %v711, %v711
    %v717 = vcombine.low %v665, %v671
    %v718 = vcombine.low %v677, %v683
    %v720 = vunpack.c.l.s4 1966171168
    %v721 = vunpack.c.0.s8 %v720
    %v722 = vlaneseq
    %v723 = vshrl.u32 %v722, 7
    %v724 = vsub.s32 %v721, %v723
    %v725 = vrot.slane %v717, %v724
    %v727 = vunpack.c.l.s4 1966171168
    %v728 = vunpack.c.0.s8 %v727
    %v729 = vlaneseq
    %v730 = vshrl.u32 %v729, 7
    %v731 = vsub.s32 %v728, %v730
    %v732 = vrot.slane %v718, %v731
    %v733 = vcombine.low %v725, %v732
    %v735 = vunpack.c.l.s4 1966171168
    %v736 = vunpack.c.0.s8 %v735
    %v737 = vlaneseq
    %v738 = vshrl.u32 %v737, 7
    %v739 = vsub.s32 %v736, %v738
    %v740 = vrot.slane %v733, %v739
    %vm741 = vcmask 1040384
    %vm742 = vsmask.f32 256
    %vm743 = vmand %vm741, %vm742
    %vm744 = vcmask 1041409
    %vm745 = vsmask.f32 1280
    %vm746 = vmand %vm744, %vm745
    %vm747 = vmor %vm746, %vm743
    %vm748 = vcmask 1042434
    %vm749 = vsmask.f32 2304
    %vm750 = vmand %vm748, %vm749
    %vm751 = vmor %vm750, %vm747
    %vm752 = vcmask 1043459
    %vm753 = vsmask.f32 3328
    %vm754 = vmand %vm752, %vm753
    %vm755 = vmor %vm754, %vm751
    %v756 = vld [vmem:[#allocation6] sm:$0xf]
    %v757 = vsel %vm755, %v740, %v756
    %758 = vst [vmem:[#allocation6] sm:$0xf] %v757
    %v759 = vcombine.low %v697, %v703
    %v760 = vcombine.low %v709, %v715
    %v762 = vunpack.c.l.s4 1966171168
    %v763 = vunpack.c.0.s8 %v762
    %v764 = vlaneseq
    %v765 = vshrl.u32 %v764, 7
    %v766 = vsub.s32 %v763, %v765
    %v767 = vrot.slane %v759, %v766
    %v769 = vunpack.c.l.s4 1966171168
    %v770 = vunpack.c.0.s8 %v769
    %v771 = vlaneseq
    %v772 = vshrl.u32 %v771, 7
    %v773 = vsub.s32 %v770, %v772
    %v774 = vrot.slane %v760, %v773
    %v775 = vcombine.low %v767, %v774
    %v777 = vunpack.c.l.s4 1966171168
    %v778 = vunpack.c.0.s8 %v777
    %v779 = vlaneseq
    %v780 = vshrl.u32 %v779, 7
    %v781 = vsub.s32 %v778, %v780
    %v782 = vrot.slane %v775, %v781
    %v783 = vld [vmem:[#allocation7] sm:$0xf]
    %v784 = vsel %vm755, %v782, %v783
    %785 = vst [vmem:[#allocation7] sm:$0xf] %v784
    // Predicated region
    $region14: #{tpu_custom_call.1} parent=1 // pred_check
      _
    $region15: #{tpu_custom_call.1} parent=1 // pred_check_branch
      %787 = sbr.rel (0) target = $region17
    $region16: #{tpu_custom_call.1} parent=1 // pred_region
      %s789 = ssub.s32 64, 64
      %790 = vsyncadd [#allocation5], %s789
      %s792 = sshll.u32 [#allocation6], 4
      %s793 = int_to_ptr.vmem [resolvable:$true] %s792
      %795 = dma.vmem_to_hbm [thread:$0]  %s793, 64, %s2, [#allocation5]
    $region17: #{tpu_custom_call.1} parent=1 // pred_fallthru
      _
    // Predicated region
    $region18: #{tpu_custom_call.1} parent=1 // pred_check
      _
    $region19: #{tpu_custom_call.1} parent=1 // pred_check_branch
      %797 = sbr.rel (0) target = $region21
    $region20: #{tpu_custom_call.1} parent=1 // pred_region
      %s799 = ssub.s32 64, 64
      %800 = vsyncadd [#allocation8], %s799
      %s802 = sshll.u32 [#allocation7], 4
      %s803 = int_to_ptr.vmem [resolvable:$true] %s802
      %805 = dma.vmem_to_hbm [thread:$0]  %s803, 64, %s3, [#allocation8]
    $region21: #{tpu_custom_call.1} parent=1 // pred_fallthru
      _
    // Predicated region
    $region22: #{tpu_custom_call.1} parent=1 // pred_check
      _
    $region23: #{tpu_custom_call.1} parent=1 // pred_check_branch
      %807 = sbr.rel (0) target = $region25
    $region24: #{tpu_custom_call.1} parent=1 // pred_region
      %808 = dma.done [#allocation5], 64
    $region25: #{tpu_custom_call.1} parent=1 // pred_fallthru
      _
    // Predicated region
    $region26: #{tpu_custom_call.1} parent=1 // pred_check
      _
    $region27: #{tpu_custom_call.1} parent=1 // pred_check_branch
      %810 = sbr.rel (0) target = $region29
    $region28: #{tpu_custom_call.1} parent=1 // pred_region
      %811 = dma.done [#allocation8], 64
    $region29: #{tpu_custom_call.1} parent=1 // pred_fallthru
      _
    %812 = vsyncpa [#allocation4], 1
    %813 = vsyncpa [#allocation5], 1
    %814 = vsyncpa [#allocation8], 1

</llo_original>
